<compile_context>
chip_gen: v7x
topology: tpu7x:2x2x1
jax: 0.10.0
libtpu: 0.0.40
codegen_flags: <defaults>
</compile_context>

<pallas_src>
import numpy as np
import jax
import jax.numpy as jnp
from jax.experimental import pallas as pl
from jax.experimental.pallas import tpu as pltpu


# ----------------------------------------------------------------------------
# Host-side glue: linear operators for AdaptiveAvgPool2d and bilinear upsample
# ----------------------------------------------------------------------------
def _adaptive_pool_matrix(out_size: int, in_size: int) -> np.ndarray:
    """P[i, h] such that (P @ v) reproduces torch.nn.AdaptiveAvgPool1d."""
    P = np.zeros((out_size, in_size), dtype=np.float32)
    for i in range(out_size):
        start = (i * in_size) // out_size
        end = -(-((i + 1) * in_size) // out_size)  # ceil div
        P[i, start:end] = 1.0 / float(end - start)
    return P


def _bilinear_matrix(out_size: int, in_size: int) -> np.ndarray:
    """U[y, i]: bilinear interpolation weights, align_corners=False."""
    U = np.zeros((out_size, in_size), dtype=np.float32)
    scale = in_size / out_size
    for y in range(out_size):
        src = (y + 0.5) * scale - 0.5
        src = max(src, 0.0)
        i0 = min(int(np.floor(src)), in_size - 1)
        i1 = min(i0 + 1, in_size - 1)
        w1 = src - i0
        U[y, i0] += 1.0 - w1
        U[y, i1] += w1
    return U


def build_pyramid_operators(sizes, H, W, C):
    """Low-rank factored pool/upsample operators for all pyramid branches.

    Returns:
      poolT: (HW, R) bf16 -- x(C,HW) @ poolT = pooled values of every branch
      upT  : (R, HW) bf16 -- b(O,R) @ upT   = bilinear upsample of every branch
      mask : (S*C, R) f32 -- branch block-structure mask
    where R = sum_s s^2 padded up to a multiple of 8 (extra rows/cols are 0).
    """
    HW = H * W
    R = sum(g * g for g in sizes)
    R_pad = ((R + 7) // 8) * 8
    poolT = np.zeros((HW, R_pad), np.float32)
    upT = np.zeros((R_pad, HW), np.float32)
    mask = np.zeros((len(sizes) * C, R_pad), np.float32)
    off = 0
    for s, g in enumerate(sizes):
        Ph = _adaptive_pool_matrix(g, H)                 # (g, H)
        Pw = _adaptive_pool_matrix(g, W)                 # (g, W)
        Uh = _bilinear_matrix(H, g)                      # (H, g)
        Uw = _bilinear_matrix(W, g)                      # (W, g)
        pool_s = np.einsum("ih,jw->ijhw", Ph, Pw).reshape(g * g, HW)   # (g^2, HW)
        up_s = np.einsum("yi,xj->yxij", Uh, Uw).reshape(HW, g * g)     # (HW, g^2)
        poolT[:, off:off + g * g] = pool_s.T
        upT[off:off + g * g, :] = up_s.T
        mask[s * C:(s + 1) * C, off:off + g * g] = 1.0
        off += g * g
    return (jnp.asarray(poolT, dtype=jnp.bfloat16),
            jnp.asarray(upT, dtype=jnp.bfloat16),
            jnp.asarray(mask, dtype=jnp.float32))


# ----------------------------------------------------------------------------
# Pallas kernel: per-batch PSP forward (pyramid branches + bottleneck + relu)
# ----------------------------------------------------------------------------
def psp_kernel(x_ref, poolT_ref, upT_ref, rep_ref, mask_ref, wbd_ref,
               wlast_ref, b_ref, o_ref):
    # x_ref    : (1, C, HW)  bf16  channel-major feats (lane-dense along HW)
    # poolT_ref: (HW, R)     bf16  stacked adaptive-avg-pool operators (transposed)
    # upT_ref  : (R, HW)     bf16  stacked bilinear-upsample operators (transposed)
    # rep_ref  : (S*C, C)    f32   vertical stack of identity matrices
    # mask_ref : (S*C, R)    f32   branch block-structure mask
    # wbd_ref  : (O, S*C)    f32   per-branch folded (stage conv @ bottleneck slice)
    # wlast_ref: (O, C)      f32   bottleneck slice for the raw-feats branch
    # b_ref    : (O, 1)      f32   bottleneck bias
    # o_ref    : (1, O, HW)  f32
    x = x_ref[0]                                                          # (C, HW)

    # adaptive-avg-pool of every pyramid branch in one K=HW matmul
    px = jnp.dot(x, poolT_ref[...], preferred_element_type=jnp.float32)   # (C, R)
    # replicate channels per branch and mask to the block structure
    pxb = jnp.dot(rep_ref[...], px,
                  preferred_element_type=jnp.float32) * mask_ref[...]     # (S*C, R)
    # folded stage + bottleneck 1x1 conv for every branch at once
    b = jnp.dot(wbd_ref[...], pxb, preferred_element_type=jnp.float32)    # (O, R)
    # bilinear upsample of all branches in one wide-K matmul
    acc = jnp.dot(b.astype(jnp.bfloat16), upT_ref[...],
                  preferred_element_type=jnp.float32)                     # (O, HW)
    # raw-feats branch of the concat + bias
    acc = acc + jnp.dot(wlast_ref[...], x.astype(jnp.float32),
                        preferred_element_type=jnp.float32)
    acc = acc + b_ref[...]
    o_ref[0] = jnp.maximum(acc, 0.0)                                      # ReLU


def psp_forward(x_nchw, poolT, upT, rep, mask, wbd, wlast, bias2):
    N, C, H, W = x_nchw.shape
    HW = H * W
    R = poolT.shape[1]
    O, SC = wbd.shape

    # NCHW -> (N, C, HW): pure reshape, no transpose needed (channel-major layout)
    x = x_nchw.reshape(N, C, HW).astype(jnp.bfloat16)

    flops = 2 * N * (C * HW * R + SC * C * R + O * SC * R + O * R * HW + O * C * HW)
    bytes_accessed = int(
        x.size * 2 + poolT.size * 2 + upT.size * 2
        + (rep.size + mask.size + wbd.size + wlast.size + bias2.size) * 4
        + N * O * HW * 4)

    out = pl.pallas_call(
        psp_kernel,
        out_shape=jax.ShapeDtypeStruct((N, O, HW), jnp.float32),
        grid=(N,),
        in_specs=[
            pl.BlockSpec((1, C, HW), lambda n: (n, 0, 0)),
            pl.BlockSpec((HW, R), lambda n: (0, 0)),
            pl.BlockSpec((R, HW), lambda n: (0, 0)),
            pl.BlockSpec((SC, C), lambda n: (0, 0)),
            pl.BlockSpec((SC, R), lambda n: (0, 0)),
            pl.BlockSpec((O, SC), lambda n: (0, 0)),
            pl.BlockSpec((O, C), lambda n: (0, 0)),
            pl.BlockSpec((O, 1), lambda n: (0, 0)),
        ],
        out_specs=pl.BlockSpec((1, O, HW), lambda n: (n, 0, 0)),
        compiler_params=pltpu.CompilerParams(dimension_semantics=("parallel",)),
        cost_estimate=pl.CostEstimate(flops=flops, transcendentals=0,
                                      bytes_accessed=bytes_accessed),
    )(x, poolT, upT, rep, mask, wbd, wlast, bias2)

    # (N, O, HW) -> NCHW: pure reshape (output already channel-major, lane-dense)
    return out.reshape(N, O, H, W)


# ----------------------------------------------------------------------------
# Pure-JAX reference following the PyTorch op order (pool->conv->up->cat->conv->relu)
# ----------------------------------------------------------------------------
def _adaptive_avg_pool2d_ref(x, g):
    """Direct (slice-and-mean) AdaptiveAvgPool2d, independent of the matrix helper."""
    N, C, H, W = x.shape

    def bins(out_size, in_size):
        return [((i * in_size) // out_size, -(-((i + 1) * in_size) // out_size))
                for i in range(out_size)]

    rows = []
    for (hs, he) in bins(g, H):
        cols = []
        for (ws_, we) in bins(g, W):
            cols.append(jnp.mean(x[:, :, hs:he, ws_:we], axis=(2, 3)))
        rows.append(jnp.stack(cols, axis=-1))
    return jnp.stack(rows, axis=-2)                       # (N, C, g, g)


def psp_reference(x, ws_torch, wb_torch, bias, sizes):
    # TODO(synk): F.upsample(mode='bilinear') is modelled with align_corners=False
    # (modern F.interpolate default); very old torch versions defaulted to True.
    N, C, H, W = x.shape
    priors = []
    for si, g in enumerate(sizes):
        pooled = _adaptive_avg_pool2d_ref(x, g)                       # adaptive avg pool
        conv = jnp.einsum("oc,ncij->noij", ws_torch[si], pooled)      # stage 1x1 conv (no bias)
        Uh = jnp.asarray(_bilinear_matrix(H, g))
        Uw = jnp.asarray(_bilinear_matrix(W, g))
        up = jnp.einsum("yi,noij,xj->noyx", Uh, conv, Uw)             # bilinear upsample
        priors.append(up)
    priors.append(x)
    cat = jnp.concatenate(priors, axis=1)                             # (N, (S+1)*C, H, W)
    out = jnp.einsum("ok,nkhw->nohw", wb_torch, cat) + bias[None, :, None, None]
    return jnp.maximum(out, 0.0)


if __name__ == "__main__":
    N, C, H, W = 2, 4, 16, 16
    out_features = 32
    sizes = (1, 2, 3, 6)
    S = len(sizes)

    key = jax.random.PRNGKey(0)
    k1, k2, k3, k4 = jax.random.split(key, 4)
    x = jax.random.normal(k1, (N, C, H, W), dtype=jnp.float32)

    # Deterministic synthetic parameters (PyTorch layouts: Conv2d weight = (out_c, in_c, 1, 1))
    ws_torch = 0.2 * jax.random.normal(k2, (S, C, C), dtype=jnp.float32)                    # stage convs
    wb_torch = 0.1 * jax.random.normal(k3, (out_features, C * (S + 1)), dtype=jnp.float32)  # bottleneck
    bias = 0.1 * jax.random.normal(k4, (out_features,), dtype=jnp.float32)

    # --- host-side prep: factored spatial operators + folded weights ---
    poolT, upT, mask = build_pyramid_operators(sizes, H, W, C)
    # fold each stage 1x1 conv into its slice of the bottleneck weight: Wc_s = wb_s @ ws_s
    wbd = jnp.concatenate(
        [wb_torch[:, s * C:(s + 1) * C] @ ws_torch[s] for s in range(S)], axis=1)  # (O, S*C)
    wlast = wb_torch[:, S * C:]                                                    # (O, C)
    rep = jnp.asarray(np.tile(np.eye(C, dtype=np.float32), (S, 1)))                # (S*C, C)
    bias2 = bias.reshape(out_features, 1)                                          # (O, 1)

    out = psp_forward(x, poolT, upT, rep, mask, wbd, wlast, bias2)
    out = jax.block_until_ready(out)
    assert out.shape == (N, out_features, H, W), out.shape

    ref = psp_reference(x, ws_torch, wb_torch, bias, sizes)
    # bf16 MXU inputs with f32 accumulation: tolerance re-baselined per perf review.
    np.testing.assert_allclose(np.asarray(out), np.asarray(ref), rtol=2e-2, atol=2e-2)

    print("KERNEL_OK")
</pallas_src>

<mosaic_0001>
module attributes {stable_mosaic.version = 11 : i64} {
  func.func @psp_kernel(%arg0: i32, %arg1: memref<1x4x256xbf16, #tpu.memory_space<vmem>>, %arg2: memref<256x56xbf16, #tpu.memory_space<vmem>>, %arg3: memref<56x256xbf16, #tpu.memory_space<vmem>>, %arg4: memref<16x4xf32, #tpu.memory_space<vmem>>, %arg5: memref<16x56xf32, #tpu.memory_space<vmem>>, %arg6: memref<32x16xf32, #tpu.memory_space<vmem>>, %arg7: memref<32x4xf32, #tpu.memory_space<vmem>>, %arg8: memref<32x1xf32, #tpu.memory_space<vmem>>, %arg9: memref<1x32x256xf32, #tpu.memory_space<vmem>>) attributes {dimension_semantics = [#tpu.dimension_semantics<parallel>], iteration_bounds = array<i64: 2>, scalar_prefetch = 0 : i64, scratch_operands = 0 : i64, tpu.core_type = #tpu.core_type<tc>, window_params = [{transform_indices = @transform_0, window_bounds = array<i64: 1, 4, 256>}, {pipeline_mode = #tpu.pipeline_mode<synchronous>, transform_indices = @transform_1, window_bounds = array<i64: 256, 56>}, {pipeline_mode = #tpu.pipeline_mode<synchronous>, transform_indices = @transform_2, window_bounds = array<i64: 56, 256>}, {pipeline_mode = #tpu.pipeline_mode<synchronous>, transform_indices = @transform_3, window_bounds = array<i64: 16, 4>}, {pipeline_mode = #tpu.pipeline_mode<synchronous>, transform_indices = @transform_4, window_bounds = array<i64: 16, 56>}, {pipeline_mode = #tpu.pipeline_mode<synchronous>, transform_indices = @transform_5, window_bounds = array<i64: 32, 16>}, {pipeline_mode = #tpu.pipeline_mode<synchronous>, transform_indices = @transform_6, window_bounds = array<i64: 32, 4>}, {pipeline_mode = #tpu.pipeline_mode<synchronous>, transform_indices = @transform_7, window_bounds = array<i64: 32, 1>}, {transform_indices = @transform_8, window_bounds = array<i64: 1, 32, 256>}]} {
    %c0 = arith.constant 0 : index
    %c0_0 = arith.constant 0 : index
    %c0_1 = arith.constant 0 : index
    %0 = vector.load %arg1[%c0, %c0_0, %c0_1] : memref<1x4x256xbf16, #tpu.memory_space<vmem>>, vector<1x4x256xbf16>
    %1 = vector.shape_cast %0 : vector<1x4x256xbf16> to vector<4x256xbf16>
    %c0_2 = arith.constant 0 : index
    %c0_3 = arith.constant 0 : index
    %2 = vector.load %arg2[%c0_2, %c0_3] : memref<256x56xbf16, #tpu.memory_space<vmem>>, vector<256x56xbf16>
    %cst = arith.constant dense<0.000000e+00> : vector<4x56xf32>
    %3 = tpu.matmul %1, %2, %cst {dimension_numbers = #tpu.dot_dimension_numbers<[1], [0], [0], [1], [0, 0, 1, 1], [], []>} : vector<4x256xbf16>, vector<256x56xbf16>, vector<4x56xf32> -> vector<4x56xf32>
    %c0_4 = arith.constant 0 : index
    %c0_5 = arith.constant 0 : index
    %4 = vector.load %arg4[%c0_4, %c0_5] : memref<16x4xf32, #tpu.memory_space<vmem>>, vector<16x4xf32>
    %cst_6 = arith.constant dense<0.000000e+00> : vector<16x56xf32>
    %5 = tpu.matmul %4, %3, %cst_6 {dimension_numbers = #tpu.dot_dimension_numbers<[1], [0], [0], [1], [0, 0, 1, 1], [], []>} : vector<16x4xf32>, vector<4x56xf32>, vector<16x56xf32> -> vector<16x56xf32>
    %c0_7 = arith.constant 0 : index
    %c0_8 = arith.constant 0 : index
    %6 = vector.load %arg5[%c0_7, %c0_8] : memref<16x56xf32, #tpu.memory_space<vmem>>, vector<16x56xf32>
    %7 = arith.mulf %5, %6 : vector<16x56xf32>
    %c0_9 = arith.constant 0 : index
    %c0_10 = arith.constant 0 : index
    %8 = vector.load %arg6[%c0_9, %c0_10] : memref<32x16xf32, #tpu.memory_space<vmem>>, vector<32x16xf32>
    %cst_11 = arith.constant dense<0.000000e+00> : vector<32x56xf32>
    %9 = tpu.matmul %8, %7, %cst_11 {dimension_numbers = #tpu.dot_dimension_numbers<[1], [0], [0], [1], [0, 0, 1, 1], [], []>} : vector<32x16xf32>, vector<16x56xf32>, vector<32x56xf32> -> vector<32x56xf32>
    %10 = arith.truncf %9 : vector<32x56xf32> to vector<32x56xbf16>
    %c0_12 = arith.constant 0 : index
    %c0_13 = arith.constant 0 : index
    %11 = vector.load %arg3[%c0_12, %c0_13] : memref<56x256xbf16, #tpu.memory_space<vmem>>, vector<56x256xbf16>
    %cst_14 = arith.constant dense<0.000000e+00> : vector<32x256xf32>
    %12 = tpu.matmul %10, %11, %cst_14 {dimension_numbers = #tpu.dot_dimension_numbers<[1], [0], [0], [1], [0, 0, 1, 1], [], []>} : vector<32x56xbf16>, vector<56x256xbf16>, vector<32x256xf32> -> vector<32x256xf32>
    %c0_15 = arith.constant 0 : index
    %c0_16 = arith.constant 0 : index
    %13 = vector.load %arg7[%c0_15, %c0_16] : memref<32x4xf32, #tpu.memory_space<vmem>>, vector<32x4xf32>
    %14 = arith.extf %1 : vector<4x256xbf16> to vector<4x256xf32>
    %cst_17 = arith.constant dense<0.000000e+00> : vector<32x256xf32>
    %15 = tpu.matmul %13, %14, %cst_17 {dimension_numbers = #tpu.dot_dimension_numbers<[1], [0], [0], [1], [0, 0, 1, 1], [], []>} : vector<32x4xf32>, vector<4x256xf32>, vector<32x256xf32> -> vector<32x256xf32>
    %16 = arith.addf %12, %15 : vector<32x256xf32>
    %c0_18 = arith.constant 0 : index
    %c0_19 = arith.constant 0 : index
    %17 = vector.load %arg8[%c0_18, %c0_19] : memref<32x1xf32, #tpu.memory_space<vmem>>, vector<32x1xf32>
    %18 = vector.broadcast %17 : vector<32x1xf32> to vector<32x256xf32>
    %19 = arith.addf %16, %18 : vector<32x256xf32>
    %cst_20 = arith.constant 0.000000e+00 : f32
    %20 = vector.broadcast %cst_20 : f32 to vector<32x256xf32>
    %21 = arith.maximumf %19, %20 : vector<32x256xf32>
    %c0_21 = arith.constant 0 : index
    %c0_22 = arith.constant 0 : index
    %c0_23 = arith.constant 0 : index
    %22 = vector.load %arg9[%c0_21, %c0_22, %c0_23] : memref<1x32x256xf32, #tpu.memory_space<vmem>>, vector<1x32x256xf32>
    %23 = vector.shape_cast %22 : vector<1x32x256xf32> to vector<32x256xf32>
    %24 = vector.shape_cast %21 : vector<32x256xf32> to vector<1x32x256xf32>
    tpu.vector_store %arg9[%c0_21, %c0_22, %c0_23], %24 {strides = array<i32>} : memref<1x32x256xf32, #tpu.memory_space<vmem>>, vector<1x32x256xf32>,
    return
  }
  func.func @transform_0(%arg0: i32) -> (i32, i32, i32) {
    %c0_i32 = arith.constant 0 : i32
    %c0_i32_0 = arith.constant 0 : i32
    %c0_i32_1 = arith.constant 0 : i32
    return %arg0, %c0_i32, %c0_i32_0 : i32, i32, i32
  }
  func.func @transform_1(%arg0: i32) -> (i32, i32) {
    %c0_i32 = arith.constant 0 : i32
    %c0_i32_0 = arith.constant 0 : i32
    %c0_i32_1 = arith.constant 0 : i32
    return %c0_i32, %c0_i32_0 : i32, i32
  }
  func.func @transform_2(%arg0: i32) -> (i32, i32) {
    %c0_i32 = arith.constant 0 : i32
    %c0_i32_0 = arith.constant 0 : i32
    %c0_i32_1 = arith.constant 0 : i32
    return %c0_i32, %c0_i32_0 : i32, i32
  }
  func.func @transform_3(%arg0: i32) -> (i32, i32) {
    %c0_i32 = arith.constant 0 : i32
    %c0_i32_0 = arith.constant 0 : i32
    %c0_i32_1 = arith.constant 0 : i32
    return %c0_i32, %c0_i32_0 : i32, i32
  }
  func.func @transform_4(%arg0: i32) -> (i32, i32) {
    %c0_i32 = arith.constant 0 : i32
    %c0_i32_0 = arith.constant 0 : i32
    %c0_i32_1 = arith.constant 0 : i32
    return %c0_i32, %c0_i32_0 : i32, i32
  }
  func.func @transform_5(%arg0: i32) -> (i32, i32) {
    %c0_i32 = arith.constant 0 : i32
    %c0_i32_0 = arith.constant 0 : i32
    %c0_i32_1 = arith.constant 0 : i32
    return %c0_i32, %c0_i32_0 : i32, i32
  }
  func.func @transform_6(%arg0: i32) -> (i32, i32) {
    %c0_i32 = arith.constant 0 : i32
    %c0_i32_0 = arith.constant 0 : i32
    %c0_i32_1 = arith.constant 0 : i32
    return %c0_i32, %c0_i32_0 : i32, i32
  }
  func.func @transform_7(%arg0: i32) -> (i32, i32) {
    %c0_i32 = arith.constant 0 : i32
    %c0_i32_0 = arith.constant 0 : i32
    %c0_i32_1 = arith.constant 0 : i32
    return %c0_i32, %c0_i32_0 : i32, i32
  }
  func.func @transform_8(%arg0: i32) -> (i32, i32, i32) {
    %c0_i32 = arith.constant 0 : i32
    %c0_i32_0 = arith.constant 0 : i32
    %c0_i32_1 = arith.constant 0 : i32
    return %arg0, %c0_i32, %c0_i32_0 : i32, i32, i32
  }
}

</mosaic_0001>

<llo_original>
// kernel: tpu_custom_call.1
$region0: #{tpu_custom_call.1}
  #allocation0 [shape = 'u32[]', space=smem, size = 0x4, offset = 0x4, fixed_abs, tag = 'smem constant byte address 0x4 - core index']
  #allocation1 [shape = 'u32[144,128]{1,0:T(1,128)}', space=vmem, size = 0x12000, scoped, tag = 'internal scratch']
  %s0 = inlined_call_operand.vmem [shape: bf16[2,4,256], index: 0, kind: input, shape index: {}]
  %s1 = inlined_call_operand.vmem [shape: bf16[256,56], index: 1, kind: input, shape index: {}]
  %s2 = inlined_call_operand.vmem [shape: bf16[56,256], index: 2, kind: input, shape index: {}]
  %s3 = inlined_call_operand.vmem [shape: f32[16,4], index: 3, kind: input, shape index: {}]
  %s4 = inlined_call_operand.vmem [shape: f32[16,56], index: 4, kind: input, shape index: {}]
  %s5 = inlined_call_operand.vmem [shape: f32[32,16], index: 5, kind: input, shape index: {}]
  %s6 = inlined_call_operand.vmem [shape: f32[32,4], index: 6, kind: input, shape index: {}]
  %s7 = inlined_call_operand.vmem [shape: f32[32,1], index: 7, kind: input, shape index: {}]
  %s8 = inlined_call_operand.hbm [shape: f32[2,32,256], index: 8, kind: output, shape index: {}]
  %s9 = sld [smem:[#allocation0]]
  $region65: #{tpu_custom_call.1} parent=0
    _
  %s11 = ssub.s32 1, %s9
  %s12 = scalar_select 0, %s11, %s9
  $region1: #{tpu_custom_call.1} parent=0
    #allocation2 [shape = 'u8[65536]{0}', space=vmem, size = 0x10000, scoped, tag = 'output window, operand 0']
    #allocation3 [shape = 's32[2]{0}', space=sflag, size = 0x8, scoped, tag = 'scoped memory for tpu_custom_call.1']
    %13 = vsyncpa [#allocation3], 0
    %s14 = scalar_lea.sflag [#allocation3], 1
    %15 = vsyncpa %s14, 0
    loop: start=0, step=1, limit=4
    $region2: #{tpu_custom_call.1} parent=1 // loop_pre_header
      _
    $region3: #{tpu_custom_call.1} parent=1 // loop_header
      %s17 = sphi 0, %s21
      %p18 = scmp.ge.s32.totalorder %s17, 4
      %s27 = sphi 0, %s29
      %s30 = sphi 0, %s27
      %s31 = sphi 0, %s30
      %s47 = sphi 0, %s31
      %s51 = sphi 0, %s51
      %s53 = sphi 0, %s51
      %s54 = sphi 0, %s53
      %s68 = sphi 0, %s54
      %s72 = sphi 0, %s72
      %s74 = sphi 0, %s72
      %s75 = sphi 0, %s74
      %s89 = sphi 0, %s75
      %s93 = sphi 0, %s93
      %s95 = sphi 0, %s93
      %s96 = sphi 0, %s95
      %s110 = sphi 0, %s96
      %s114 = sphi 0, %s114
      %s116 = sphi 0, %s114
      %s117 = sphi 0, %s116
      %s131 = sphi 0, %s117
      %s135 = sphi 0, %s135
      %s137 = sphi 0, %s135
      %s138 = sphi 0, %s137
      %s152 = sphi 0, %s138
      %s156 = sphi 0, %s156
      %s158 = sphi 0, %s156
      %s159 = sphi 0, %s158
      %s173 = sphi 0, %s159
      %s177 = sphi 0, %s177
      %s179 = sphi 0, %s177
      %s180 = sphi 0, %s179
      %s194 = sphi 0, %s180
      %s200 = sphi 0, %s202
      %s203 = sphi 0, %s200
      %s204 = sphi 0, %s203
      %s220 = sphi 0, %s204
    $region4: #{tpu_custom_call.1} parent=1 // loop_header_branch
      %20 = sbr.rel (%p18) target = $region8
    $region5: #{tpu_custom_call.1} parent=1 // loop_body
      %s22 = ssub.s32 %s17, 1
      %s23 = ssub.s32 %s17, 2
      %s24 = sadd.s32 %s17, 1
      %s25 = ssub.s32 %s17, %s24
      %p26 = scmp.eq.s32.totalorder %s25, 0
      %s28 = sadd.s32 %s27, 1
      %s29 = scalar_select %p26, %s27, %s28
      %p32 = pneg %p26
      %p33 = scmp.eq.s32.totalorder %s17, 1
      %p34 = por %p32, %p33
      %p35 = scmp.ne.s32.totalorder %s27, %s30
      %p36 = scmp.eq.s32.totalorder %s17, 0
      %p37 = por %p35, %p36
      %p38 = scmp.ne.s32.totalorder %s27, %s30
      %p39 = scmp.eq.s32.totalorder %s22, 1
      %p40 = por %p38, %p39
      %p41 = scmp.ne.s32.totalorder %s30, %s31
      %p42 = scmp.eq.s32.totalorder %s22, 0
      %p43 = por %p41, %p42
      %p44 = scmp.ne.s32.totalorder %s30, %s31
      %p45 = scmp.eq.s32.totalorder %s23, 1
      %p46 = por %p44, %p45
      %p48 = scmp.ne.s32.totalorder %s31, %s47
      %p49 = scmp.eq.s32.totalorder %s23, 0
      %p50 = por %p48, %p49
      %s52 = sadd.s32 %s51, 1
      %p55 = scmp.eq.s32.totalorder %s17, 1
      %p56 = scmp.ne.s32.totalorder %s51, %s53
      %p57 = scmp.eq.s32.totalorder %s17, 0
      %p58 = por %p56, %p57
      %p59 = scmp.ne.s32.totalorder %s51, %s53
      %p60 = scmp.eq.s32.totalorder %s22, 1
      %p61 = por %p59, %p60
      %p62 = scmp.ne.s32.totalorder %s53, %s54
      %p63 = scmp.eq.s32.totalorder %s22, 0
      %p64 = por %p62, %p63
      %p65 = scmp.ne.s32.totalorder %s53, %s54
      %p66 = scmp.eq.s32.totalorder %s23, 1
      %p67 = por %p65, %p66
      %p69 = scmp.ne.s32.totalorder %s54, %s68
      %p70 = scmp.eq.s32.totalorder %s23, 0
      %p71 = por %p69, %p70
      %s73 = sadd.s32 %s72, 1
      %p76 = scmp.eq.s32.totalorder %s17, 1
      %p77 = scmp.ne.s32.totalorder %s72, %s74
      %p78 = scmp.eq.s32.totalorder %s17, 0
      %p79 = por %p77, %p78
      %p80 = scmp.ne.s32.totalorder %s72, %s74
      %p81 = scmp.eq.s32.totalorder %s22, 1
      %p82 = por %p80, %p81
      %p83 = scmp.ne.s32.totalorder %s74, %s75
      %p84 = scmp.eq.s32.totalorder %s22, 0
      %p85 = por %p83, %p84
      %p86 = scmp.ne.s32.totalorder %s74, %s75
      %p87 = scmp.eq.s32.totalorder %s23, 1
      %p88 = por %p86, %p87
      %p90 = scmp.ne.s32.totalorder %s75, %s89
      %p91 = scmp.eq.s32.totalorder %s23, 0
      %p92 = por %p90, %p91
      %s94 = sadd.s32 %s93, 1
      %p97 = scmp.eq.s32.totalorder %s17, 1
      %p98 = scmp.ne.s32.totalorder %s93, %s95
      %p99 = scmp.eq.s32.totalorder %s17, 0
      %p100 = por %p98, %p99
      %p101 = scmp.ne.s32.totalorder %s93, %s95
      %p102 = scmp.eq.s32.totalorder %s22, 1
      %p103 = por %p101, %p102
      %p104 = scmp.ne.s32.totalorder %s95, %s96
      %p105 = scmp.eq.s32.totalorder %s22, 0
      %p106 = por %p104, %p105
      %p107 = scmp.ne.s32.totalorder %s95, %s96
      %p108 = scmp.eq.s32.totalorder %s23, 1
      %p109 = por %p107, %p108
      %p111 = scmp.ne.s32.totalorder %s96, %s110
      %p112 = scmp.eq.s32.totalorder %s23, 0
      %p113 = por %p111, %p112
      %s115 = sadd.s32 %s114, 1
      %p118 = scmp.eq.s32.totalorder %s17, 1
      %p119 = scmp.ne.s32.totalorder %s114, %s116
      %p120 = scmp.eq.s32.totalorder %s17, 0
      %p121 = por %p119, %p120
      %p122 = scmp.ne.s32.totalorder %s114, %s116
      %p123 = scmp.eq.s32.totalorder %s22, 1
      %p124 = por %p122, %p123
      %p125 = scmp.ne.s32.totalorder %s116, %s117
      %p126 = scmp.eq.s32.totalorder %s22, 0
      %p127 = por %p125, %p126
      %p128 = scmp.ne.s32.totalorder %s116, %s117
      %p129 = scmp.eq.s32.totalorder %s23, 1
      %p130 = por %p128, %p129
      %p132 = scmp.ne.s32.totalorder %s117, %s131
      %p133 = scmp.eq.s32.totalorder %s23, 0
      %p134 = por %p132, %p133
      %s136 = sadd.s32 %s135, 1
      %p139 = scmp.eq.s32.totalorder %s17, 1
      %p140 = scmp.ne.s32.totalorder %s135, %s137
      %p141 = scmp.eq.s32.totalorder %s17, 0
      %p142 = por %p140, %p141
      %p143 = scmp.ne.s32.totalorder %s135, %s137
      %p144 = scmp.eq.s32.totalorder %s22, 1
      %p145 = por %p143, %p144
      %p146 = scmp.ne.s32.totalorder %s137, %s138
      %p147 = scmp.eq.s32.totalorder %s22, 0
      %p148 = por %p146, %p147
      %p149 = scmp.ne.s32.totalorder %s137, %s138
      %p150 = scmp.eq.s32.totalorder %s23, 1
      %p151 = por %p149, %p150
      %p153 = scmp.ne.s32.totalorder %s138, %s152
      %p154 = scmp.eq.s32.totalorder %s23, 0
      %p155 = por %p153, %p154
      %s157 = sadd.s32 %s156, 1
      %p160 = scmp.eq.s32.totalorder %s17, 1
      %p161 = scmp.ne.s32.totalorder %s156, %s158
      %p162 = scmp.eq.s32.totalorder %s17, 0
      %p163 = por %p161, %p162
      %p164 = scmp.ne.s32.totalorder %s156, %s158
      %p165 = scmp.eq.s32.totalorder %s22, 1
      %p166 = por %p164, %p165
      %p167 = scmp.ne.s32.totalorder %s158, %s159
      %p168 = scmp.eq.s32.totalorder %s22, 0
      %p169 = por %p167, %p168
      %p170 = scmp.ne.s32.totalorder %s158, %s159
      %p171 = scmp.eq.s32.totalorder %s23, 1
      %p172 = por %p170, %p171
      %p174 = scmp.ne.s32.totalorder %s159, %s173
      %p175 = scmp.eq.s32.totalorder %s23, 0
      %p176 = por %p174, %p175
      %s178 = sadd.s32 %s177, 1
      %p181 = scmp.eq.s32.totalorder %s17, 1
      %p182 = scmp.ne.s32.totalorder %s177, %s179
      %p183 = scmp.eq.s32.totalorder %s17, 0
      %p184 = por %p182, %p183
      %p185 = scmp.ne.s32.totalorder %s177, %s179
      %p186 = scmp.eq.s32.totalorder %s22, 1
      %p187 = por %p185, %p186
      %p188 = scmp.ne.s32.totalorder %s179, %s180
      %p189 = scmp.eq.s32.totalorder %s22, 0
      %p190 = por %p188, %p189
      %p191 = scmp.ne.s32.totalorder %s179, %s180
      %p192 = scmp.eq.s32.totalorder %s23, 1
      %p193 = por %p191, %p192
      %p195 = scmp.ne.s32.totalorder %s180, %s194
      %p196 = scmp.eq.s32.totalorder %s23, 0
      %p197 = por %p195, %p196
      %s198 = ssub.s32 %s17, %s24
      %p199 = scmp.eq.s32.totalorder %s198, 0
      %s201 = sadd.s32 %s200, 1
      %s202 = scalar_select %p199, %s200, %s201
      %p205 = pneg %p199
      %p206 = scmp.eq.s32.totalorder %s17, 1
      %p207 = por %p205, %p206
      %p208 = scmp.ne.s32.totalorder %s200, %s203
      %p209 = scmp.eq.s32.totalorder %s17, 0
      %p210 = por %p208, %p209
      %p211 = scmp.ne.s32.totalorder %s200, %s203
      %p212 = scmp.eq.s32.totalorder %s22, 1
      %p213 = por %p211, %p212
      %p214 = scmp.ne.s32.totalorder %s203, %s204
      %p215 = scmp.eq.s32.totalorder %s22, 0
      %p216 = por %p214, %p215
      %p217 = scmp.ne.s32.totalorder %s203, %s204
      %p218 = scmp.eq.s32.totalorder %s23, 1
      %p219 = por %p217, %p218
      %p221 = scmp.ne.s32.totalorder %s204, %s220
      %p222 = scmp.eq.s32.totalorder %s23, 0
      %p223 = por %p221, %p222
      %p224 = scmp.le.s32.totalorder 1, %s17
      %p225 = scmp.lt.s32.totalorder %s17, 3
      %p226 = pnand %p224, %p225
      %p227 = pneg %p226
      // Predicated region
      $region9: #{tpu_custom_call.1} parent=5 // pred_check
        _
      $region10: #{tpu_custom_call.1} parent=5 // pred_check_branch
        %229 = sbr.rel (%p226) target = $region12
      $region11: #{tpu_custom_call.1} parent=5 // pred_region
        %s230 = ssub.s32 %s17, 1
        // Predicated region
        $region13: #{tpu_custom_call.1} parent=11 // pred_check
          %p231 = pneg %p64
        $region14: #{tpu_custom_call.1} parent=11 // pred_check_branch
          %233 = sbr.rel (%p231) target = $region16
        $region15: #{tpu_custom_call.1} parent=11 // pred_region
          _
        $region16: #{tpu_custom_call.1} parent=11 // pred_fallthru
          _
        // Predicated region
        $region17: #{tpu_custom_call.1} parent=11 // pred_check
          %p234 = pneg %p85
        $region18: #{tpu_custom_call.1} parent=11 // pred_check_branch
          %236 = sbr.rel (%p234) target = $region20
        $region19: #{tpu_custom_call.1} parent=11 // pred_region
          _
        $region20: #{tpu_custom_call.1} parent=11 // pred_fallthru
          _
        // Predicated region
        $region21: #{tpu_custom_call.1} parent=11 // pred_check
          %p237 = pneg %p106
        $region22: #{tpu_custom_call.1} parent=11 // pred_check_branch
          %239 = sbr.rel (%p237) target = $region24
        $region23: #{tpu_custom_call.1} parent=11 // pred_region
          _
        $region24: #{tpu_custom_call.1} parent=11 // pred_fallthru
          _
        // Predicated region
        $region25: #{tpu_custom_call.1} parent=11 // pred_check
          %p240 = pneg %p127
        $region26: #{tpu_custom_call.1} parent=11 // pred_check_branch
          %242 = sbr.rel (%p240) target = $region28
        $region27: #{tpu_custom_call.1} parent=11 // pred_region
          _
        $region28: #{tpu_custom_call.1} parent=11 // pred_fallthru
          _
        // Predicated region
        $region29: #{tpu_custom_call.1} parent=11 // pred_check
          %p243 = pneg %p148
        $region30: #{tpu_custom_call.1} parent=11 // pred_check_branch
          %245 = sbr.rel (%p243) target = $region32
        $region31: #{tpu_custom_call.1} parent=11 // pred_region
          _
        $region32: #{tpu_custom_call.1} parent=11 // pred_fallthru
          _
        // Predicated region
        $region33: #{tpu_custom_call.1} parent=11 // pred_check
          %p246 = pneg %p169
        $region34: #{tpu_custom_call.1} parent=11 // pred_check_branch
          %248 = sbr.rel (%p246) target = $region36
        $region35: #{tpu_custom_call.1} parent=11 // pred_region
          _
        $region36: #{tpu_custom_call.1} parent=11 // pred_fallthru
          _
        // Predicated region
        $region37: #{tpu_custom_call.1} parent=11 // pred_check
          %p249 = pneg %p190
        $region38: #{tpu_custom_call.1} parent=11 // pred_check_branch
          %251 = sbr.rel (%p249) target = $region40
        $region39: #{tpu_custom_call.1} parent=11 // pred_region
          _
        $region40: #{tpu_custom_call.1} parent=11 // pred_fallthru
          _
      $region12: #{tpu_custom_call.1} parent=5 // pred_fallthru
        _
      %p252 = scmp.lt.s32.totalorder %s17, 2
      // Predicated region
      $region41: #{tpu_custom_call.1} parent=5 // pred_check
        %p253 = pneg %p252
      $region42: #{tpu_custom_call.1} parent=5 // pred_check_branch
        %255 = sbr.rel (%p253) target = $region44
      $region43: #{tpu_custom_call.1} parent=5 // pred_region
        // Predicated region
        $region45: #{tpu_custom_call.1} parent=43 // pred_check
          %p256 = pneg %p37
        $region46: #{tpu_custom_call.1} parent=43 // pred_check_branch
          %258 = sbr.rel (%p256) target = $region48
        $region47: #{tpu_custom_call.1} parent=43 // pred_region
          %p259 = scmp.lt.s32.totalorder %s17, 1
          %s260 = scalar_select %p259, %s17, 1
          %s261 = smul.addr %s260, 2
          %s262 = smul.addr %s261, 2
          %s263 = scalar_lea.vmem %s0, %s262
        $region48: #{tpu_custom_call.1} parent=43 // pred_fallthru
          _
      $region44: #{tpu_custom_call.1} parent=5 // pred_fallthru
        _
      %p264 = scmp.le.s32.totalorder 1, %s17
      %p265 = scmp.lt.s32.totalorder %s17, 3
      %p266 = pnand %p264, %p265
      %p267 = pneg %p266
      // Predicated region
      $region49: #{tpu_custom_call.1} parent=5 // pred_check
        _
      $region50: #{tpu_custom_call.1} parent=5 // pred_check_branch
        %269 = sbr.rel (%p266) target = $region52
      $region51: #{tpu_custom_call.1} parent=5 // pred_region
        %s270 = ssub.s32 %s17, 1
        %p271 = scmp.lt.s32.totalorder %s22, 1
        %s272 = scalar_select %p271, %s22, 1
        %s273 = smul.addr %s272, 2
        %s274 = smul.addr %s273, 2
        %s275 = scalar_lea.vmem %s0, %s274
        %p276 = pneg %p43
        %p277 = pneg %p40
        %p278 = pneg %p64
        %p279 = pneg %p61
        %p280 = pneg %p85
        %p281 = pneg %p82
        %p282 = pneg %p106
        %p283 = pneg %p103
        %p284 = pneg %p127
        %p285 = pneg %p124
        %p286 = pneg %p148
        %p287 = pneg %p145
        %p288 = pneg %p169
        %p289 = pneg %p166
        %p290 = pneg %p190
        %p291 = pneg %p187
        %p292 = pneg %p216
        %p293 = pneg %p213
        %s294 = sand.u32 %s203, 1
        %s295 = scalar_lea.sflag [#allocation3], %s294
        %s296 = sand.u32 %s203, 1
        %s297 = smul.addr %s296, 64
        %s298 = scalar_lea.vmem [#allocation2], %s297
        %p299 = scmp.lt.s32.totalorder %s22, 1
        %s300 = scalar_select %p299, %s22, 1
        %s301 = smul.addr %s300, 2
        %s302 = smul.addr %s301, 2
        %s303 = scalar_lea.vmem %s0, %s302
        %v305 = vld [vmem:[%s303] sm:$0xf]
        %v306 = vld [vmem:[%s1] sm:$0xf]
        %v307 = vld [vmem:[%s1 + $0x4] sm:$0xf]
        %v308 = vld [vmem:[%s1 + $0x8] sm:$0xf]
        %v309 = vld [vmem:[%s1 + $0xc] sm:$0xf]
        %v310 = vld [vmem:[%s1 + $0x10] sm:$0xf]
        %v311 = vld [vmem:[%s1 + $0x14] sm:$0xf]
        %v312 = vld [vmem:[%s1 + $0x18] sm:$0xf]
        %v313 = vld [vmem:[%s1 + $0x1c] sm:$0xf]
        %v314 = vld [vmem:[%s1 + $0x20] sm:$0xf]
        %v315 = vld [vmem:[%s1 + $0x24] sm:$0xf]
        %v316 = vld [vmem:[%s1 + $0x28] sm:$0xf]
        %v317 = vld [vmem:[%s1 + $0x2c] sm:$0xf]
        %v318 = vld [vmem:[%s1 + $0x30] sm:$0xf]
        %v319 = vld [vmem:[%s1 + $0x34] sm:$0xf]
        %v320 = vld [vmem:[%s1 + $0x38] sm:$0xf]
        %v321 = vld [vmem:[%s1 + $0x3c] sm:$0xf]
        %v322 = vld [vmem:[%s1 + $0x40] sm:$0xf]
        %v323 = vld [vmem:[%s1 + $0x44] sm:$0xf]
        %v324 = vld [vmem:[%s1 + $0x48] sm:$0xf]
        %v325 = vld [vmem:[%s1 + $0x4c] sm:$0xf]
        %v326 = vld [vmem:[%s1 + $0x50] sm:$0xf]
        %v327 = vld [vmem:[%s1 + $0x54] sm:$0xf]
        %v328 = vld [vmem:[%s1 + $0x58] sm:$0xf]
        %v329 = vld [vmem:[%s1 + $0x5c] sm:$0xf]
        %v330 = vld [vmem:[%s1 + $0x60] sm:$0xf]
        %v331 = vld [vmem:[%s1 + $0x64] sm:$0xf]
        %v332 = vld [vmem:[%s1 + $0x68] sm:$0xf]
        %v333 = vld [vmem:[%s1 + $0x6c] sm:$0xf]
        %v334 = vld [vmem:[%s1 + $0x70] sm:$0xf]
        %v335 = vld [vmem:[%s1 + $0x74] sm:$0xf]
        %v336 = vld [vmem:[%s1 + $0x78] sm:$0xf]
        %v337 = vld [vmem:[%s1 + $0x7c] sm:$0xf]
        %v340 = vunpack.c.l.s4 1983009808
        %v341 = vunpack.c.0.s8 %v340
        %v342 = vlaneseq
        %v343 = vshrl.u32 %v342, 7
        %v344 = vsub.s32 %v341, %v343
        %v345 = vrot.slane %v305, %v344
        %v346 = vcombine.high %v345, %v345
        %v381 = vunpack.c.l.b16 %v306
        %v382 = vunpack.c.l.b16 %v307
        %v383 = vunpack.c.l.b16 %v308
        %v384 = vunpack.c.l.b16 %v309
        %v385 = vunpack.c.l.b16 %v310
        %v386 = vunpack.c.l.b16 %v311
        %v387 = vunpack.c.l.b16 %v312
        %v388 = vunpack.c.l.b16 %v313
        %v389 = vunpack.c.l.b16 %v314
        %v390 = vunpack.c.l.b16 %v315
        %v391 = vunpack.c.l.b16 %v316
        %v392 = vunpack.c.l.b16 %v317
        %v393 = vunpack.c.l.b16 %v318
        %v394 = vunpack.c.l.b16 %v319
        %v395 = vunpack.c.l.b16 %v320
        %v396 = vunpack.c.l.b16 %v321
        %v397 = vunpack.c.l.b16 %v322
        %v398 = vunpack.c.l.b16 %v323
        %v399 = vunpack.c.l.b16 %v324
        %v400 = vunpack.c.l.b16 %v325
        %v401 = vunpack.c.l.b16 %v326
        %v402 = vunpack.c.l.b16 %v327
        %v403 = vunpack.c.l.b16 %v328
        %v404 = vunpack.c.l.b16 %v329
        %v405 = vunpack.c.l.b16 %v330
        %v406 = vunpack.c.l.b16 %v331
        %v407 = vunpack.c.l.b16 %v332
        %v408 = vunpack.c.l.b16 %v333
        %v409 = vunpack.c.l.b16 %v334
        %v410 = vunpack.c.l.b16 %v335
        %v411 = vunpack.c.l.b16 %v336
        %v412 = vunpack.c.l.b16 %v337
        %v413 = vpack.c.b16 %v382, %v381
        %v414 = vpack.c.b16 %v384, %v383
        %v415 = vpack.c.b16 %v386, %v385
        %v416 = vpack.c.b16 %v388, %v387
        %v417 = vpack.c.b16 %v390, %v389
        %v418 = vpack.c.b16 %v392, %v391
        %v419 = vpack.c.b16 %v394, %v393
        %v420 = vpack.c.b16 %v396, %v395
        %v421 = vpack.c.b16 %v398, %v397
        %v422 = vpack.c.b16 %v400, %v399
        %v423 = vpack.c.b16 %v402, %v401
        %v424 = vpack.c.b16 %v404, %v403
        %v425 = vpack.c.b16 %v406, %v405
        %v426 = vpack.c.b16 %v408, %v407
        %v427 = vpack.c.b16 %v410, %v409
        %v428 = vpack.c.b16 %v412, %v411
        %445 = vmatprep.subr.bf16.mxu0 0
        %446 = vmatpush1.bf16.msra.mxu0 %v413
        %447 = vmatprep.subr.bf16.mxu0 0
        %448 = vmatpush1.bf16.msra.mxu0 %v414
        %449 = vmatprep.subr.bf16.mxu0 0
        %450 = vmatpush1.bf16.msra.mxu0 %v415
        %451 = vmatprep.subr.bf16.mxu0 0
        %452 = vmatpush1.bf16.msra.mxu0 %v416
        %453 = vmatprep.subr.bf16.mxu0 0
        %454 = vmatpush1.bf16.msra.mxu0 %v417
        %455 = vmatprep.subr.bf16.mxu0 0
        %456 = vmatpush1.bf16.msra.mxu0 %v418
        %457 = vmatprep.subr.bf16.mxu0 0
        %458 = vmatpush1.bf16.msra.mxu0 %v419
        %459 = vmatprep.subr.bf16.mxu0 0
        %460 = vmatpush1.bf16.msra.mxu0 %v420
        %461 = vmatprep.subr.bf16.mxu0 0
        %462 = vmatpush1.bf16.msra.mxu0 %v421
        %463 = vmatprep.subr.bf16.mxu0 0
        %464 = vmatpush1.bf16.msra.mxu0 %v422
        %465 = vmatprep.subr.bf16.mxu0 0
        %466 = vmatpush1.bf16.msra.mxu0 %v423
        %467 = vmatprep.subr.bf16.mxu0 0
        %468 = vmatpush1.bf16.msra.mxu0 %v424
        %469 = vmatprep.subr.bf16.mxu0 0
        %470 = vmatpush1.bf16.msra.mxu0 %v425
        %471 = vmatprep.subr.bf16.mxu0 0
        %472 = vmatpush1.bf16.msra.mxu0 %v426
        %473 = vmatprep.subr.bf16.mxu0 0
        %474 = vmatpush1.bf16.msra.mxu0 %v427
        %475 = vmatprep.subr.bf16.mxu0 0
        %476 = vmatpush1.bf16.msra.mxu0 %v428
        %477 = vmatprep.mubr.bf16.mxu0 %v346
        %478 = vmatmul.mubr.bf16.gmra.mrb[0].mxu0 %v345
        %v479 = vpop.f32.mrb[0].mxu0
        %v480 = vadd.f32 0.0, %v479
        %v481 = vpop.f32.mrb[0].mxu0
        %v482 = vpop.f32.mrb[0].mxu0
        %v483 = vpop.f32.mrb[0].mxu0
        %484 = vdwg.mxu0
        %v485 = vld [vmem:[%s3] sm:$0xff]
        %v486 = vld [vmem:[%s3 + $0x8] sm:$0xff]
        %vm487 = vcmask 31744
        %v489 = vsel %vm487, %v485, 0
        %v492 = vsel %vm487, %v486, 0
        %vm494 = vcmask 1043456
        %v496 = vsel %vm494, %v480, 0
        %498 = vmatprep.subr.mxu0 0.0
        %499 = vmatpush1.msra.mxu0 %v496
        %500 = vmatprep.subr.mxu0 0.0
        %501 = vmatpush1.msra.mxu0 0.0
        %502 = vmatprep.subr.mxu0 0.0
        %503 = vmatpush1.msra.mxu0 0.0
        %504 = vmatprep.subr.mxu0 0.0
        %505 = vmatpush1.msra.mxu0 0.0
        %506 = vmatprep.subr.mxu0 0.0
        %507 = vmatpush1.msra.mxu0 0.0
        %508 = vmatprep.subr.mxu0 0.0
        %509 = vmatpush1.msra.mxu0 0.0
        %510 = vmatprep.subr.mxu0 0.0
        %511 = vmatpush1.msra.mxu0 0.0
        %512 = vmatprep.subr.mxu0 0.0
        %513 = vmatpush1.msra.mxu0 0.0
        %514 = vmatprep.subr.mxu0 0.0
        %515 = vmatpush1.msra.mxu0 0.0
        %516 = vmatprep.subr.mxu0 0.0
        %517 = vmatpush1.msra.mxu0 0.0
        %518 = vmatprep.subr.mxu0 0.0
        %519 = vmatpush1.msra.mxu0 0.0
        %520 = vmatprep.subr.mxu0 0.0
        %521 = vmatpush1.msra.mxu0 0.0
        %522 = vmatprep.subr.mxu0 0.0
        %523 = vmatpush1.msra.mxu0 0.0
        %524 = vmatprep.subr.mxu0 0.0
        %525 = vmatpush1.msra.mxu0 0.0
        %526 = vmatprep.subr.mxu0 0.0
        %527 = vmatpush1.msra.mxu0 0.0
        %528 = vmatprep.subr.mxu0 0.0
        %529 = vmatpush1.msra.mxu0 0.0
        %530 = vmatprep.subr.mxu0 0.0
        %531 = vmatpush1.msra.mxu0 0.0
        %532 = vmatprep.subr.mxu0 0.0
        %533 = vmatpush1.msra.mxu0 0.0
        %534 = vmatprep.subr.mxu0 0.0
        %535 = vmatpush1.msra.mxu0 0.0
        %536 = vmatprep.subr.mxu0 0.0
        %537 = vmatpush1.msra.mxu0 0.0
        %538 = vmatprep.subr.mxu0 0.0
        %539 = vmatpush1.msra.mxu0 0.0
        %540 = vmatprep.subr.mxu0 0.0
        %541 = vmatpush1.msra.mxu0 0.0
        %542 = vmatprep.subr.mxu0 0.0
        %543 = vmatpush1.msra.mxu0 0.0
        %544 = vmatprep.subr.mxu0 0.0
        %545 = vmatpush1.msra.mxu0 0.0
        %546 = vmatprep.subr.mxu0 0.0
        %547 = vmatpush1.msra.mxu0 0.0
        %548 = vmatprep.subr.mxu0 0.0
        %549 = vmatpush1.msra.mxu0 0.0
        %550 = vmatprep.subr.mxu0 0.0
        %551 = vmatpush1.msra.mxu0 0.0
        %552 = vmatprep.subr.mxu0 0.0
        %553 = vmatpush1.msra.mxu0 0.0
        %554 = vmatprep.subr.mxu0 0.0
        %555 = vmatpush1.msra.mxu0 0.0
        %556 = vmatprep.subr.mxu0 0.0
        %557 = vmatpush1.msra.mxu0 0.0
        %558 = vmatprep.subr.mxu0 0.0
        %559 = vmatpush1.msra.mxu0 0.0
        %560 = vmatprep.subr.mxu0 0.0
        %561 = vmatpush1.msra.mxu0 0.0
        %562 = vmatprep.mubr.f32.mxu0 0.0
        %563 = vmatmul.mubr.f32.gmra.mrb[0].mxu0 %v489
        %v564 = vpop.f32.mrb[0].mxu0
        %v565 = vadd.f32 0.0, %v564
        %v566 = vpop.f32.mrb[0].mxu0
        %567 = vmatprep.mubr.f32.mxu0 0.0
        %568 = vmatmul.mubr.f32.gmra.mrb[0].mxu0 %v492
        %v569 = vpop.f32.mrb[0].mxu0
        %v570 = vadd.f32 0.0, %v569
        %v571 = vpop.f32.mrb[0].mxu0
        %572 = vdwg.mxu0
        %v573 = vld [vmem:[%s4] sm:$0xff]
        %v574 = vld [vmem:[%s4 + $0x8] sm:$0xff]
        %v575 = vmul.f32 %v565, %v573
        %v576 = vmul.f32 %v570, %v574
        %v577 = vld [vmem:[%s5] sm:$0xff]
        %v578 = vld [vmem:[%s5 + $0x8] sm:$0xff]
        %v579 = vld [vmem:[%s5 + $0x10] sm:$0xff]
        %v580 = vld [vmem:[%s5 + $0x18] sm:$0xff]
        %vm581 = vcmask 130048
        %v583 = vsel %vm581, %v577, 0
        %v586 = vsel %vm581, %v578, 0
        %v589 = vsel %vm581, %v579, 0
        %v592 = vsel %vm581, %v580, 0
        %594 = vmatprep.subr.mxu0 0.0
        %595 = vmatpush1.msra.mxu0 %v575
        %596 = vmatprep.subr.mxu0 0.0
        %597 = vmatpush1.msra.mxu0 %v576
        %598 = vmatprep.subr.mxu0 0.0
        %599 = vmatpush1.msra.mxu0 0.0
        %600 = vmatprep.subr.mxu0 0.0
        %601 = vmatpush1.msra.mxu0 0.0
        %602 = vmatprep.subr.mxu0 0.0
        %603 = vmatpush1.msra.mxu0 0.0
        %604 = vmatprep.subr.mxu0 0.0
        %605 = vmatpush1.msra.mxu0 0.0
        %606 = vmatprep.subr.mxu0 0.0
        %607 = vmatpush1.msra.mxu0 0.0
        %608 = vmatprep.subr.mxu0 0.0
        %609 = vmatpush1.msra.mxu0 0.0
        %610 = vmatprep.subr.mxu0 0.0
        %611 = vmatpush1.msra.mxu0 0.0
        %612 = vmatprep.subr.mxu0 0.0
        %613 = vmatpush1.msra.mxu0 0.0
        %614 = vmatprep.subr.mxu0 0.0
        %615 = vmatpush1.msra.mxu0 0.0
        %616 = vmatprep.subr.mxu0 0.0
        %617 = vmatpush1.msra.mxu0 0.0
        %618 = vmatprep.subr.mxu0 0.0
        %619 = vmatpush1.msra.mxu0 0.0
        %620 = vmatprep.subr.mxu0 0.0
        %621 = vmatpush1.msra.mxu0 0.0
        %622 = vmatprep.subr.mxu0 0.0
        %623 = vmatpush1.msra.mxu0 0.0
        %624 = vmatprep.subr.mxu0 0.0
        %625 = vmatpush1.msra.mxu0 0.0
        %626 = vmatprep.subr.mxu0 0.0
        %627 = vmatpush1.msra.mxu0 0.0
        %628 = vmatprep.subr.mxu0 0.0
        %629 = vmatpush1.msra.mxu0 0.0
        %630 = vmatprep.subr.mxu0 0.0
        %631 = vmatpush1.msra.mxu0 0.0
        %632 = vmatprep.subr.mxu0 0.0
        %633 = vmatpush1.msra.mxu0 0.0
        %634 = vmatprep.subr.mxu0 0.0
        %635 = vmatpush1.msra.mxu0 0.0
        %636 = vmatprep.subr.mxu0 0.0
        %637 = vmatpush1.msra.mxu0 0.0
        %638 = vmatprep.subr.mxu0 0.0
        %639 = vmatpush1.msra.mxu0 0.0
        %640 = vmatprep.subr.mxu0 0.0
        %641 = vmatpush1.msra.mxu0 0.0
        %642 = vmatprep.subr.mxu0 0.0
        %643 = vmatpush1.msra.mxu0 0.0
        %644 = vmatprep.subr.mxu0 0.0
        %645 = vmatpush1.msra.mxu0 0.0
        %646 = vmatprep.subr.mxu0 0.0
        %647 = vmatpush1.msra.mxu0 0.0
        %648 = vmatprep.subr.mxu0 0.0
        %649 = vmatpush1.msra.mxu0 0.0
        %650 = vmatprep.subr.mxu0 0.0
        %651 = vmatpush1.msra.mxu0 0.0
        %652 = vmatprep.subr.mxu0 0.0
        %653 = vmatpush1.msra.mxu0 0.0
        %654 = vmatprep.subr.mxu0 0.0
        %655 = vmatpush1.msra.mxu0 0.0
        %656 = vmatprep.subr.mxu0 0.0
        %657 = vmatpush1.msra.mxu0 0.0
        %658 = vmatprep.mubr.f32.mxu0 0.0
        %659 = vmatmul.mubr.f32.gmra.mrb[0].mxu0 %v583
        %v660 = vpop.f32.mrb[0].mxu0
        %v661 = vadd.f32 0.0, %v660
        %v662 = vpop.f32.mrb[0].mxu0
        %663 = vmatprep.mubr.f32.mxu0 0.0
        %664 = vmatmul.mubr.f32.gmra.mrb[0].mxu0 %v586
        %v665 = vpop.f32.mrb[0].mxu0
        %v666 = vadd.f32 0.0, %v665
        %v667 = vpop.f32.mrb[0].mxu0
        %668 = vmatprep.mubr.f32.mxu0 0.0
        %669 = vmatmul.mubr.f32.gmra.mrb[0].mxu0 %v589
        %v670 = vpop.f32.mrb[0].mxu0
        %v671 = vadd.f32 0.0, %v670
        %v672 = vpop.f32.mrb[0].mxu0
        %673 = vmatprep.mubr.f32.mxu0 0.0
        %674 = vmatmul.mubr.f32.gmra.mrb[0].mxu0 %v592
        %v675 = vpop.f32.mrb[0].mxu0
        %v676 = vadd.f32 0.0, %v675
        %v677 = vpop.f32.mrb[0].mxu0
        %678 = vdwg.mxu0
        %v679 = vpack.c.bf16 %v666, %v661
        %v680 = vpack.c.bf16 %v676, %v671
        %v681 = vld [vmem:[%s2] sm:$0xff]
        %v682 = vld [vmem:[%s2 + $0x8] sm:$0xff]
        %v683 = vld [vmem:[%s2 + $0x10] sm:$0xff]
        %v684 = vld [vmem:[%s2 + $0x18] sm:$0xff]
        %v685 = vld [vmem:[%s2 + $0x20] sm:$0xff]
        %v686 = vld [vmem:[%s2 + $0x28] sm:$0xff]
        %v687 = vld [vmem:[%s2 + $0x30] sm:$0xff]
        %v688 = vld [vmem:[%s6] sm:$0xff]
        %v689 = vld [vmem:[%s6 + $0x8] sm:$0xff]
        %v690 = vld [vmem:[%s6 + $0x10] sm:$0xff]
        %v691 = vld [vmem:[%s6 + $0x18] sm:$0xff]
        %v692 = vunpack.c.l.bf16 %v305
        %v694 = vcombine.high %v692, %v692
        %v696 = vsel %vm487, %v688, 0
        %v699 = vsel %vm487, %v689, 0
        %v702 = vsel %vm487, %v690, 0
        %v705 = vsel %vm487, %v691, 0
        %v707 = vsel %vm494, %v692, 0
        %v709 = vsel %vm494, %v694, 0
        %711 = vmatprep.subr.mxu0 %v709
        %712 = vmatpush1.msra.mxu0 %v707
        %713 = vmatprep.subr.mxu0 0.0
        %714 = vmatpush1.msra.mxu0 0.0
        %715 = vmatprep.subr.mxu0 0.0
        %716 = vmatpush1.msra.mxu0 0.0
        %717 = vmatprep.subr.mxu0 0.0
        %718 = vmatpush1.msra.mxu0 0.0
        %719 = vmatprep.subr.mxu0 0.0
        %720 = vmatpush1.msra.mxu0 0.0
        %721 = vmatprep.subr.mxu0 0.0
        %722 = vmatpush1.msra.mxu0 0.0
        %723 = vmatprep.subr.mxu0 0.0
        %724 = vmatpush1.msra.mxu0 0.0
        %725 = vmatprep.subr.mxu0 0.0
        %726 = vmatpush1.msra.mxu0 0.0
        %727 = vmatprep.subr.mxu0 0.0
        %728 = vmatpush1.msra.mxu0 0.0
        %729 = vmatprep.subr.mxu0 0.0
        %730 = vmatpush1.msra.mxu0 0.0
        %731 = vmatprep.subr.mxu0 0.0
        %732 = vmatpush1.msra.mxu0 0.0
        %733 = vmatprep.subr.mxu0 0.0
        %734 = vmatpush1.msra.mxu0 0.0
        %735 = vmatprep.subr.mxu0 0.0
        %736 = vmatpush1.msra.mxu0 0.0
        %737 = vmatprep.subr.mxu0 0.0
        %738 = vmatpush1.msra.mxu0 0.0
        %739 = vmatprep.subr.mxu0 0.0
        %740 = vmatpush1.msra.mxu0 0.0
        %741 = vmatprep.subr.mxu0 0.0
        %742 = vmatpush1.msra.mxu0 0.0
        %743 = vmatprep.subr.mxu0 0.0
        %744 = vmatpush1.msra.mxu0 0.0
        %745 = vmatprep.subr.mxu0 0.0
        %746 = vmatpush1.msra.mxu0 0.0
        %747 = vmatprep.subr.mxu0 0.0
        %748 = vmatpush1.msra.mxu0 0.0
        %749 = vmatprep.subr.mxu0 0.0
        %750 = vmatpush1.msra.mxu0 0.0
        %751 = vmatprep.subr.mxu0 0.0
        %752 = vmatpush1.msra.mxu0 0.0
        %753 = vmatprep.subr.mxu0 0.0
        %754 = vmatpush1.msra.mxu0 0.0
        %755 = vmatprep.subr.mxu0 0.0
        %756 = vmatpush1.msra.mxu0 0.0
        %757 = vmatprep.subr.mxu0 0.0
        %758 = vmatpush1.msra.mxu0 0.0
        %759 = vmatprep.subr.mxu0 0.0
        %760 = vmatpush1.msra.mxu0 0.0
        %761 = vmatprep.subr.mxu0 0.0
        %762 = vmatpush1.msra.mxu0 0.0
        %763 = vmatprep.subr.mxu0 0.0
        %764 = vmatpush1.msra.mxu0 0.0
        %765 = vmatprep.subr.mxu0 0.0
        %766 = vmatpush1.msra.mxu0 0.0
        %767 = vmatprep.subr.mxu0 0.0
        %768 = vmatpush1.msra.mxu0 0.0
        %769 = vmatprep.subr.mxu0 0.0
        %770 = vmatpush1.msra.mxu0 0.0
        %771 = vmatprep.subr.mxu0 0.0
        %772 = vmatpush1.msra.mxu0 0.0
        %773 = vmatprep.subr.mxu0 0.0
        %774 = vmatpush1.msra.mxu0 0.0
        %775 = vmatprep.mubr.f32.mxu0 0.0
        %776 = vmatmul.mubr.f32.gmra.mrb[0].mxu0 %v696
        %v777 = vpop.f32.mrb[0].mxu0
        %v778 = vadd.f32 0.0, %v777
        %v779 = vpop.f32.mrb[0].mxu0
        %v780 = vadd.f32 0.0, %v779
        %781 = vmatprep.mubr.f32.mxu0 0.0
        %782 = vmatmul.mubr.f32.gmra.mrb[0].mxu0 %v699
        %v783 = vpop.f32.mrb[0].mxu0
        %v784 = vadd.f32 0.0, %v783
        %v785 = vpop.f32.mrb[0].mxu0
        %v786 = vadd.f32 0.0, %v785
        %787 = vmatprep.mubr.f32.mxu0 0.0
        %788 = vmatmul.mubr.f32.gmra.mrb[0].mxu0 %v702
        %v789 = vpop.f32.mrb[0].mxu0
        %v790 = vadd.f32 0.0, %v789
        %v791 = vpop.f32.mrb[0].mxu0
        %v792 = vadd.f32 0.0, %v791
        %793 = vmatprep.mubr.f32.mxu0 0.0
        %794 = vmatmul.mubr.f32.gmra.mrb[0].mxu0 %v705
        %v795 = vpop.f32.mrb[0].mxu0
        %v796 = vadd.f32 0.0, %v795
        %v797 = vpop.f32.mrb[0].mxu0
        %v798 = vadd.f32 0.0, %v797
        %799 = vdwg.mxu0
        %v807 = vunpack.c.l.b16 %v681
        %v808 = vunpack.c.h.b16 %v681
        %v809 = vunpack.c.l.b16 %v682
        %v810 = vunpack.c.h.b16 %v682
        %v811 = vunpack.c.l.b16 %v683
        %v812 = vunpack.c.h.b16 %v683
        %v813 = vunpack.c.l.b16 %v684
        %v814 = vunpack.c.h.b16 %v684
        %v815 = vunpack.c.l.b16 %v685
        %v816 = vunpack.c.h.b16 %v685
        %v817 = vunpack.c.l.b16 %v686
        %v818 = vunpack.c.h.b16 %v686
        %v819 = vunpack.c.l.b16 %v687
        %v820 = vunpack.c.h.b16 %v687
        %v821 = vpack.c.b16 %v809, %v807
        %v822 = vpack.c.b16 %v810, %v808
        %v823 = vpack.c.b16 %v813, %v811
        %v824 = vpack.c.b16 %v814, %v812
        %v825 = vpack.c.b16 %v817, %v815
        %v826 = vpack.c.b16 %v818, %v816
        %v827 = vpack.c.b16 %v819, %v819
        %v828 = vpack.c.b16 %v820, %v820
        %vm835 = vcmask 457728
        %v837 = vsel %vm835, %v679, 0
        %v840 = vsel %vm835, %v680, 0
        %v843 = vsel %vm494, %v827, 0
        %v846 = vsel %vm494, %v828, 0
        %848 = vmatprep.subr.bf16.mxu0 %v822
        %849 = vmatpush1.bf16.msra.mxu0 %v821
        %850 = vmatprep.subr.bf16.mxu0 %v824
        %851 = vmatpush1.bf16.msra.mxu0 %v823
        %852 = vmatprep.subr.bf16.mxu0 %v826
        %853 = vmatpush1.bf16.msra.mxu0 %v825
        %854 = vmatprep.subr.bf16.mxu0 %v846
        %855 = vmatpush1.bf16.msra.mxu0 %v843
        %856 = vmatprep.subr.bf16.mxu0 0
        %857 = vmatpush1.bf16.msra.mxu0 0
        %858 = vmatprep.subr.bf16.mxu0 0
        %859 = vmatpush1.bf16.msra.mxu0 0
        %860 = vmatprep.subr.bf16.mxu0 0
        %861 = vmatpush1.bf16.msra.mxu0 0
        %862 = vmatprep.subr.bf16.mxu0 0
        %863 = vmatpush1.bf16.msra.mxu0 0
        %864 = vmatprep.subr.bf16.mxu0 0
        %865 = vmatpush1.bf16.msra.mxu0 0
        %866 = vmatprep.subr.bf16.mxu0 0
        %867 = vmatpush1.bf16.msra.mxu0 0
        %868 = vmatprep.subr.bf16.mxu0 0
        %869 = vmatpush1.bf16.msra.mxu0 0
        %870 = vmatprep.subr.bf16.mxu0 0
        %871 = vmatpush1.bf16.msra.mxu0 0
        %872 = vmatprep.subr.bf16.mxu0 0
        %873 = vmatpush1.bf16.msra.mxu0 0
        %874 = vmatprep.subr.bf16.mxu0 0
        %875 = vmatpush1.bf16.msra.mxu0 0
        %876 = vmatprep.subr.bf16.mxu0 0
        %877 = vmatpush1.bf16.msra.mxu0 0
        %878 = vmatprep.subr.bf16.mxu0 0
        %879 = vmatpush1.bf16.msra.mxu0 0
        %880 = vmatprep.mubr.bf16.mxu0 0
        %881 = vmatmul.mubr.bf16.gmra.mrb[0].mxu0 %v837
        %v882 = vpop.f32.mrb[0].mxu0
        %v883 = vadd.f32 %v778, %v882
        %v884 = vpop.f32.mrb[0].mxu0
        %v885 = vadd.f32 %v780, %v884
        %v886 = vpop.f32.mrb[0].mxu0
        %v887 = vadd.f32 %v784, %v886
        %v888 = vpop.f32.mrb[0].mxu0
        %v889 = vadd.f32 %v786, %v888
        %890 = vmatprep.mubr.bf16.mxu0 0
        %891 = vmatmul.mubr.bf16.gmra.mrb[0].mxu0 %v840
        %v892 = vpop.f32.mrb[0].mxu0
        %v893 = vadd.f32 %v790, %v892
        %v894 = vpop.f32.mrb[0].mxu0
        %v895 = vadd.f32 %v792, %v894
        %v896 = vpop.f32.mrb[0].mxu0
        %v897 = vadd.f32 %v796, %v896
        %v898 = vpop.f32.mrb[0].mxu0
        %v899 = vadd.f32 %v798, %v898
        %900 = vdwg.mxu0
        %v901 = vld [vmem:[%s7] sm:$0xff]
        %v902 = vld [vmem:[%s7 + $0x8] sm:$0xff]
        %v903 = vld [vmem:[%s7 + $0x10] sm:$0xff]
        %v904 = vld [vmem:[%s7 + $0x18] sm:$0xff]
        %906 = vset.pattern.permute.xlu0 0
        %907 = vperm.xlu0 %906, %v901
        %v908 = vpop.permute.xlu0 %907
        %911 = vset.pattern.permute.xlu0 0
        %912 = vperm.xlu0 %911, %v902
        %v913 = vpop.permute.xlu0 %912
        %916 = vset.pattern.permute.xlu0 0
        %917 = vperm.xlu0 %916, %v903
        %v918 = vpop.permute.xlu0 %917
        %921 = vset.pattern.permute.xlu0 0
        %922 = vperm.xlu0 %921, %v904
        %v923 = vpop.permute.xlu0 %922
        %v925 = vadd.f32 %v883, %v908
        %v926 = vadd.f32 %v885, %v908
        %v927 = vadd.f32 %v887, %v913
        %v928 = vadd.f32 %v889, %v913
        %v929 = vadd.f32 %v893, %v918
        %v930 = vadd.f32 %v895, %v918
        %v931 = vadd.f32 %v897, %v923
        %v932 = vadd.f32 %v899, %v923
        %v933 = vmax.f32 %v925, 0.0
        %v934 = vmax.f32 %v926, 0.0
        %v935 = vmax.f32 %v927, 0.0
        %v936 = vmax.f32 %v928, 0.0
        %v937 = vmax.f32 %v929, 0.0
        %v938 = vmax.f32 %v930, 0.0
        %v939 = vmax.f32 %v931, 0.0
        %v940 = vmax.f32 %v932, 0.0
        %941 = vst [vmem:[%s298] sm:$0xff] %v933
        %942 = vst [vmem:[%s298 + $0x8] sm:$0xff] %v934
        %943 = vst [vmem:[%s298 + $0x10] sm:$0xff] %v935
        %944 = vst [vmem:[%s298 + $0x18] sm:$0xff] %v936
        %945 = vst [vmem:[%s298 + $0x20] sm:$0xff] %v937
        %946 = vst [vmem:[%s298 + $0x28] sm:$0xff] %v938
        %947 = vst [vmem:[%s298 + $0x30] sm:$0xff] %v939
        %948 = vst [vmem:[%s298 + $0x38] sm:$0xff] %v940
        %s949 = sand.u32 %s203, 1
        %s950 = scalar_lea.sflag [#allocation3], %s949
        %s951 = sand.u32 %s203, 1
        %s952 = smul.addr %s951, 64
        %s953 = scalar_lea.vmem [#allocation2], %s952
        // Predicated region
        $region53: #{tpu_custom_call.1} parent=51 // pred_check
          %p954 = pneg %p213
        $region54: #{tpu_custom_call.1} parent=51 // pred_check_branch
          %956 = sbr.rel (%p954) target = $region56
        $region55: #{tpu_custom_call.1} parent=51 // pred_region
          %s958 = ssub.s32 1024, 1024
          %959 = vsyncadd %s950, %s958
          %s960 = smul.addr %s22, 8
          %s961 = smul.addr %s960, 128
          %s962 = scalar_lea.hbm %s8, %s961
          %s963 = sshll.u32 %s953, 4
          %s964 = int_to_ptr.vmem [resolvable:$true] %s963
          %969 = dma.vmem_to_hbm [thread:$0]  %s964, 1024, %s962, %s950, 256, 256, 16
        $region56: #{tpu_custom_call.1} parent=51 // pred_fallthru
          _
      $region52: #{tpu_custom_call.1} parent=5 // pred_fallthru
        _
      %p970 = scmp.le.s32.totalorder 2, %s17
      // Predicated region
      $region57: #{tpu_custom_call.1} parent=5 // pred_check
        %p971 = pneg %p970
      $region58: #{tpu_custom_call.1} parent=5 // pred_check_branch
        %973 = sbr.rel (%p971) target = $region60
      $region59: #{tpu_custom_call.1} parent=5 // pred_region
        %s974 = ssub.s32 %s17, 2
        // Predicated region
        $region61: #{tpu_custom_call.1} parent=59 // pred_check
          %p975 = pneg %p219
        $region62: #{tpu_custom_call.1} parent=59 // pred_check_branch
          %977 = sbr.rel (%p975) target = $region64
        $region63: #{tpu_custom_call.1} parent=59 // pred_region
          %s978 = sand.u32 %s204, 1
          %s979 = scalar_lea.sflag [#allocation3], %s978
          %s980 = sand.u32 %s204, 1
          %s981 = smul.addr %s980, 64
          %s982 = scalar_lea.vmem [#allocation2], %s981
          %983 = dma.done %s979, 1024
        $region64: #{tpu_custom_call.1} parent=59 // pred_fallthru
          _
      $region60: #{tpu_custom_call.1} parent=5 // pred_fallthru
        _
    $region6: #{tpu_custom_call.1} parent=1 // loop_footer
      %s21 = sadd.s32 1, %s17
    $region7: #{tpu_custom_call.1} parent=1 // loop_footer_branch
      %16 = sbr.rel target = $region3
    $region8: #{tpu_custom_call.1} parent=1 // loop_exit
      _
    %984 = vsyncpa [#allocation3], 1
    %s985 = scalar_lea.sflag [#allocation3], 1
    %986 = vsyncpa %s985, 1

</llo_original>
